<compile_context>
chip_gen: v7x
topology: tpu7x:2x2x1
jax: 0.10.0
libtpu: 0.0.40
codegen_flags: <defaults>
</compile_context>

<pallas_src>
import math
import functools

import jax
import jax.numpy as jnp
from jax.experimental import pallas as pl
from jax.experimental.pallas import tpu as pltpu


def _rotate_mm_kernel(src_ref, imgT_ref, outT_ref, acc_ref, *, tk):
    """One (HW_out-tile, HW_in-tile) step of the transposed one-hot gather-matmul.

    src_ref : VMEM (tn, 1) int32 -- flattened source index of each output pixel in this
                                    HW_out tile (-1 => out of bounds => fill 0).
    imgT_ref: VMEM (tk, BC)      -- K-tile of the transposed image (HW_in, B*C).
    outT_ref: VMEM (tn, BC)      -- output tile (resident across the reduction axis).
    acc_ref : VMEM (tn, BC) f32  -- accumulator scratch.
    """
    k = pl.program_id(1)

    @pl.when(k == 0)
    def _():
        acc_ref[...] = jnp.zeros_like(acc_ref)

    # selT[p_local, q_local] = 1  iff  src_flat[p] == k*tk + q_local  (single broadcast-compare,
    # built directly in the matmul dtype; -1 / padded indices never match -> fill 0).
    k_start = pl.multiple_of(k * tk, tk)
    q = jax.lax.broadcasted_iota(jnp.int32, (1, tk), 1) + k_start          # (1, tk)
    sel = (src_ref[...] == q).astype(imgT_ref.dtype)                        # (tn, tk)

    acc_ref[...] += jnp.dot(sel, imgT_ref[...], preferred_element_type=jnp.float32)

    @pl.when(k == pl.num_programs(1) - 1)
    def _():
        outT_ref[...] = acc_ref[...].astype(outT_ref.dtype)


def rotate_image(image, angle_deg, *, tn=256, tk=256):
    """Rotate NCHW `image` by `angle_deg` degrees (nearest, expand=False, fill=0)."""
    B, C, H, W = image.shape
    BC, HW = B * C, H * W

    # ---- hoisted index computation (plain JAX; removes trig / div / iota from the kernel) ----
    rad = jnp.asarray(angle_deg, jnp.float32) * (math.pi / 180.0)
    cos_a, sin_a = jnp.cos(rad), jnp.sin(rad)
    p = jnp.arange(HW, dtype=jnp.int32)
    i = (p // W).astype(jnp.float32)
    j = (p % W).astype(jnp.float32)
    cx, cy = (W - 1) * 0.5, (H - 1) * 0.5          # pixel-grid center (expand=False, center=None)
    xg, yg = j - cx, i - cy
    src_x = cos_a * xg - sin_a * yg + cx           # inverse rotation of each output pixel
    src_y = sin_a * xg + cos_a * yg + cy
    ix = jnp.round(src_x).astype(jnp.int32)        # nearest neighbour (half-to-even)
    iy = jnp.round(src_y).astype(jnp.int32)
    valid = (ix >= 0) & (ix < W) & (iy >= 0) & (iy < H)
    src_flat = jnp.where(valid, iy * W + ix, -1)   # (HW,) ; -1 => fill 0

    # ---- tile sizes / padding (tiles: 256 default, clamp down for tiny images) ---------------
    tn = min(tn, pl.cdiv(HW, 128) * 128)
    tk = min(tk, pl.cdiv(HW, 128) * 128)
    Np = pl.cdiv(HW, tn) * tn                      # padded HW_out
    Kp = pl.cdiv(HW, tk) * tk                      # padded HW_in

    mm_dtype = jnp.bfloat16 if image.dtype == jnp.bfloat16 else jnp.float32
    imgT = image.reshape(BC, HW).astype(mm_dtype).T                 # (HW, BC): large dim on M/K
    imgT = jnp.pad(imgT, ((0, Kp - HW), (0, 0)))
    src2d = jnp.pad(src_flat, (0, Np - HW), constant_values=-1).reshape(Np, 1)

    grid = (Np // tn, Kp // tk)

    outT = pl.pallas_call(
        functools.partial(_rotate_mm_kernel, tk=tk),
        out_shape=jax.ShapeDtypeStruct((Np, BC), image.dtype),
        grid_spec=pltpu.PrefetchScalarGridSpec(
            num_scalar_prefetch=0,
            grid=grid,
            in_specs=[
                pl.BlockSpec((tn, 1), lambda ni, ki: (ni, 0)),      # src indices, HW_out tile
                pl.BlockSpec((tk, BC), lambda ni, ki: (ki, 0)),     # imgT, HW_in tile
            ],
            out_specs=pl.BlockSpec((tn, BC), lambda ni, ki: (ni, 0)),
            scratch_shapes=[pltpu.VMEM((tn, BC), jnp.float32)],
        ),
        compiler_params=pltpu.CompilerParams(
            dimension_semantics=("parallel", "arbitrary"),
            vmem_limit_bytes=32 * 1024 * 1024,
        ),
    )(src2d, imgT)

    return outT[:HW].T.reshape(B, C, H, W)


def random_choice_rotate(image, degree_choices, key, *, tn=256, tk=256):
    """Pallas equivalent of RandomChoiceRotate(degree_choices)(image). image: NCHW."""
    idx = jax.random.randint(key, (), 0, len(degree_choices))
    angle_deg = jnp.asarray(degree_choices, jnp.float32)[idx]
    return rotate_image(image, angle_deg, tn=tn, tk=tk), angle_deg


def _rotate_ref(image, angle_deg):
    """Pure-JAX reference with identical math (nearest, expand=False, fill=0)."""
    B, C, H, W = image.shape
    rad = jnp.asarray(angle_deg, jnp.float32) * (math.pi / 180.0)
    cos_a, sin_a = jnp.cos(rad), jnp.sin(rad)
    yy, xx = jnp.meshgrid(jnp.arange(H, dtype=jnp.float32),
                          jnp.arange(W, dtype=jnp.float32), indexing="ij")
    cx, cy = (W - 1) * 0.5, (H - 1) * 0.5
    xg, yg = xx - cx, yy - cy
    sx = cos_a * xg - sin_a * yg + cx
    sy = sin_a * xg + cos_a * yg + cy
    ix = jnp.round(sx).astype(jnp.int32)
    iy = jnp.round(sy).astype(jnp.int32)
    valid = (ix >= 0) & (ix < W) & (iy >= 0) & (iy < H)
    flat = jnp.where(valid, iy * W + ix, 0).reshape(-1)
    g = image.reshape(B, C, H * W)[:, :, flat].reshape(B, C, H, W)
    return jnp.where(valid[None, None], g, 0.0).astype(image.dtype)


if __name__ == "__main__":
    degree_choices = [0.0, 30.0, 90.0, 180.0, 270.0]
    key = jax.random.PRNGKey(0)
    key_img, key_choice = jax.random.split(key)

    # Test 1: the module itself (random angle choice). Small tiles so the (N, K) grid,
    # the f32 accumulator and the parallel output-tile axis are all exercised (grid = (2, 2)).
    B, C, H, W = 2, 4, 16, 16
    image = jax.random.uniform(key_img, (B, C, H, W), dtype=jnp.float32)
    out, angle = random_choice_rotate(image, degree_choices, key_choice, tn=128, tk=128)
    out = jax.block_until_ready(out)
    ref = _rotate_ref(image, angle)
    assert out.shape == image.shape and out.dtype == image.dtype
    assert jnp.allclose(out, ref, atol=1e-5), "Pallas rotation mismatch vs reference (test 1)"

    # Test 2: fixed non-axis-aligned angle + non-square image (exercises fill=0 and
    # padding of both HW_out and HW_in up to the tile size).
    image2 = jax.random.uniform(jax.random.PRNGKey(1), (1, 3, 16, 24), dtype=jnp.float32)
    ang2 = jnp.float32(30.0)
    out2 = jax.block_until_ready(rotate_image(image2, ang2, tn=256, tk=256))
    ref2 = _rotate_ref(image2, ang2)
    assert jnp.allclose(out2, ref2, atol=1e-5), "Pallas rotation mismatch vs reference (test 2)"

    print("KERNEL_OK")
</pallas_src>

<mosaic_0001>
module attributes {stable_mosaic.version = 11 : i64} {
  func.func @_rotate_mm_kernel(%arg0: i32, %arg1: i32, %arg2: memref<128x1xi32, #tpu.memory_space<vmem>>, %arg3: memref<128x8xf32, #tpu.memory_space<vmem>>, %arg4: memref<128x8xf32, #tpu.memory_space<vmem>>, %arg5: memref<128x8xf32, #tpu.memory_space<vmem>>) attributes {dimension_semantics = [#tpu.dimension_semantics<parallel>, #tpu.dimension_semantics<arbitrary>], iteration_bounds = array<i64: 2, 2>, scalar_prefetch = 0 : i64, scratch_operands = 1 : i64, tpu.core_type = #tpu.core_type<tc>, window_params = [{transform_indices = @transform_0, window_bounds = array<i64: 128, 1>}, {transform_indices = @transform_1, window_bounds = array<i64: 128, 8>}, {transform_indices = @transform_2, window_bounds = array<i64: 128, 8>}]} {
    %c0_i32 = arith.constant 0 : i32
    %0 = arith.cmpi eq, %arg1, %c0_i32 : i32
    %1 = arith.extui %0 : i1 to i32
    %c0_i32_0 = arith.constant 0 : i32
    %2 = arith.cmpi ne, %1, %c0_i32_0 : i32
    scf.if %2 {
      %cst_9 = arith.constant 0.000000e+00 : f32
      %22 = vector.broadcast %cst_9 : f32 to vector<128x8xf32>
      %c0_10 = arith.constant 0 : index
      %c0_11 = arith.constant 0 : index
      %23 = vector.load %arg5[%c0_10, %c0_11] : memref<128x8xf32, #tpu.memory_space<vmem>>, vector<128x8xf32>
      tpu.vector_store %arg5[%c0_10, %c0_11], %22 {strides = array<i32>} : memref<128x8xf32, #tpu.memory_space<vmem>>, vector<128x8xf32>,
    } else {
    }
    %c128_i32 = arith.constant 128 : i32
    %3 = arith.muli %arg1, %c128_i32 : i32
    %4 = tpu.assume_multiple %3, 128 : i32
    %5 = tpu.iota {dimensions = array<i32: 1>} : vector<1x128xi32>
    %6 = vector.broadcast %4 : i32 to vector<1x128xi32>
    %7 = arith.addi %5, %6 : vector<1x128xi32>
    %c0 = arith.constant 0 : index
    %c0_1 = arith.constant 0 : index
    %8 = vector.load %arg2[%c0, %c0_1] : memref<128x1xi32, #tpu.memory_space<vmem>>, vector<128x1xi32>
    %9 = vector.broadcast %8 : vector<128x1xi32> to vector<128x128xi32>
    %10 = vector.broadcast %7 : vector<1x128xi32> to vector<128x128xi32>
    %11 = arith.cmpi eq, %9, %10 : vector<128x128xi32>
    %12 = arith.extui %11 : vector<128x128xi1> to vector<128x128xi32>
    %13 = arith.sitofp %12 : vector<128x128xi32> to vector<128x128xf32>
    %c0_2 = arith.constant 0 : index
    %c0_3 = arith.constant 0 : index
    %14 = vector.load %arg5[%c0_2, %c0_3] : memref<128x8xf32, #tpu.memory_space<vmem>>, vector<128x8xf32>
    %c0_4 = arith.constant 0 : index
    %c0_5 = arith.constant 0 : index
    %15 = vector.load %arg3[%c0_4, %c0_5] : memref<128x8xf32, #tpu.memory_space<vmem>>, vector<128x8xf32>
    %cst = arith.constant dense<0.000000e+00> : vector<128x8xf32>
    %16 = tpu.matmul %13, %15, %cst {dimension_numbers = #tpu.dot_dimension_numbers<[1], [0], [0], [1], [0, 0, 1, 1], [], []>} : vector<128x128xf32>, vector<128x8xf32>, vector<128x8xf32> -> vector<128x8xf32>
    %17 = arith.addf %14, %16 : vector<128x8xf32>
    %c0_6 = arith.constant 0 : index
    %c0_7 = arith.constant 0 : index
    %18 = vector.load %arg5[%c0_6, %c0_7] : memref<128x8xf32, #tpu.memory_space<vmem>>, vector<128x8xf32>
    tpu.vector_store %arg5[%c0_6, %c0_7], %17 {strides = array<i32>} : memref<128x8xf32, #tpu.memory_space<vmem>>, vector<128x8xf32>,
    %c1_i32 = arith.constant 1 : i32
    %19 = arith.cmpi eq, %arg1, %c1_i32 : i32
    %20 = arith.extui %19 : i1 to i32
    %c0_i32_8 = arith.constant 0 : i32
    %21 = arith.cmpi ne, %20, %c0_i32_8 : i32
    scf.if %21 {
      %c0_9 = arith.constant 0 : index
      %c0_10 = arith.constant 0 : index
      %22 = vector.load %arg5[%c0_9, %c0_10] : memref<128x8xf32, #tpu.memory_space<vmem>>, vector<128x8xf32>
      %c0_11 = arith.constant 0 : index
      %c0_12 = arith.constant 0 : index
      %23 = vector.load %arg4[%c0_11, %c0_12] : memref<128x8xf32, #tpu.memory_space<vmem>>, vector<128x8xf32>
      tpu.vector_store %arg4[%c0_11, %c0_12], %22 {strides = array<i32>} : memref<128x8xf32, #tpu.memory_space<vmem>>, vector<128x8xf32>,
    } else {
    }
    return
  }
  func.func @transform_0(%arg0: i32, %arg1: i32) -> (i32, i32) {
    %c0_i32 = arith.constant 0 : i32
    %c0_i32_0 = arith.constant 0 : i32
    return %arg0, %c0_i32 : i32, i32
  }
  func.func @transform_1(%arg0: i32, %arg1: i32) -> (i32, i32) {
    %c0_i32 = arith.constant 0 : i32
    %c0_i32_0 = arith.constant 0 : i32
    return %arg1, %c0_i32 : i32, i32
  }
  func.func @transform_2(%arg0: i32, %arg1: i32) -> (i32, i32) {
    %c0_i32 = arith.constant 0 : i32
    %c0_i32_0 = arith.constant 0 : i32
    return %arg0, %c0_i32 : i32, i32
  }
}

</mosaic_0001>

<llo_original>
// kernel: tpu_custom_call.1
$region0: #{tpu_custom_call.1}
  #allocation0 [shape = 'u32[]', space=smem, size = 0x4, offset = 0x4, fixed_abs, tag = 'smem constant byte address 0x4 - core index']
  #allocation1 [shape = 'u32[144,128]{1,0:T(1,128)}', space=vmem, size = 0x12000, scoped, tag = 'internal scratch']
  #allocation2 [shape = 'f32[128,8]{1,0:T(8,128)}', space=vmem, size = 0x10000, scoped, tag = 'scratch operand']
  %s0 = inlined_call_operand.vmem [shape: s32[256,1], index: 0, kind: input, shape index: {}]
  %s1 = inlined_call_operand.vmem [shape: f32[256,8], index: 1, kind: input, shape index: {}]
  %s2 = inlined_call_operand.vmem [shape: f32[256,8], index: 2, kind: output, shape index: {}]
  %s3 = sld [smem:[#allocation0]]
  $region49: #{tpu_custom_call.1} parent=0
    _
  %s5 = ssub.s32 1, %s3
  %s6 = scalar_select 0, %s5, %s3
  loop: start=0, step=1, limit=6
  $region2: #{tpu_custom_call.1} parent=0 // loop_pre_header
    _
  $region3: #{tpu_custom_call.1} parent=0 // loop_header
    %s8 = sphi 0, %s12
    %p9 = scmp.ge.s32.totalorder %s8, 6
    %s15 = sphi 0, %s27
    %s16 = sphi 0, %s23
    %s17 = sphi 0, %s15
    %s18 = sphi 0, %s16
    %s19 = sphi 0, %s17
    %s20 = sphi 0, %s18
    %s30 = sphi 0, %s32
    %s33 = sphi 0, %s30
    %s34 = sphi 0, %s33
    %s50 = sphi 0, %s34
    %s56 = sphi 0, %s58
    %s59 = sphi 0, %s56
    %s60 = sphi 0, %s59
    %s76 = sphi 0, %s60
    %s82 = sphi 0, %s84
    %s85 = sphi 0, %s82
    %s86 = sphi 0, %s85
    %s102 = sphi 0, %s86
  $region4: #{tpu_custom_call.1} parent=0 // loop_header_branch
    %11 = sbr.rel (%p9) target = $region8
  $region5: #{tpu_custom_call.1} parent=0 // loop_body
    %s13 = ssub.s32 %s8, 1
    %s14 = ssub.s32 %s8, 2
    %s21 = sadd.s32 1, %s16
    %p22 = scmp.ge.s32.totalorder %s21, 2
    %s23 = scalar_select %p22, 0, %s21
    %s24 = sadd.s32 1, %s15
    %s25 = scalar_select %p22, %s24, %s15
    %p26 = scmp.ge.s32.totalorder %s25, 2
    %s27 = scalar_select %p26, 0, %s25
    %s28 = ssub.s32 %s15, %s27
    %p29 = scmp.eq.s32.totalorder %s28, 0
    %s31 = sadd.s32 %s30, 1
    %s32 = scalar_select %p29, %s30, %s31
    %p35 = pneg %p29
    %p36 = scmp.eq.s32.totalorder %s8, 3
    %p37 = por %p35, %p36
    %p38 = scmp.ne.s32.totalorder %s30, %s33
    %p39 = scmp.eq.s32.totalorder %s8, 0
    %p40 = por %p38, %p39
    %p41 = scmp.ne.s32.totalorder %s30, %s33
    %p42 = scmp.eq.s32.totalorder %s13, 3
    %p43 = por %p41, %p42
    %p44 = scmp.ne.s32.totalorder %s33, %s34
    %p45 = scmp.eq.s32.totalorder %s13, 0
    %p46 = por %p44, %p45
    %p47 = scmp.ne.s32.totalorder %s33, %s34
    %p48 = scmp.eq.s32.totalorder %s14, 3
    %p49 = por %p47, %p48
    %p51 = scmp.ne.s32.totalorder %s34, %s50
    %p52 = scmp.eq.s32.totalorder %s14, 0
    %p53 = por %p51, %p52
    %s54 = ssub.s32 %s16, %s23
    %p55 = scmp.eq.s32.totalorder %s54, 0
    %s57 = sadd.s32 %s56, 1
    %s58 = scalar_select %p55, %s56, %s57
    %p61 = pneg %p55
    %p62 = scmp.eq.s32.totalorder %s8, 3
    %p63 = por %p61, %p62
    %p64 = scmp.ne.s32.totalorder %s56, %s59
    %p65 = scmp.eq.s32.totalorder %s8, 0
    %p66 = por %p64, %p65
    %p67 = scmp.ne.s32.totalorder %s56, %s59
    %p68 = scmp.eq.s32.totalorder %s13, 3
    %p69 = por %p67, %p68
    %p70 = scmp.ne.s32.totalorder %s59, %s60
    %p71 = scmp.eq.s32.totalorder %s13, 0
    %p72 = por %p70, %p71
    %p73 = scmp.ne.s32.totalorder %s59, %s60
    %p74 = scmp.eq.s32.totalorder %s14, 3
    %p75 = por %p73, %p74
    %p77 = scmp.ne.s32.totalorder %s60, %s76
    %p78 = scmp.eq.s32.totalorder %s14, 0
    %p79 = por %p77, %p78
    %s80 = ssub.s32 %s15, %s27
    %p81 = scmp.eq.s32.totalorder %s80, 0
    %s83 = sadd.s32 %s82, 1
    %s84 = scalar_select %p81, %s82, %s83
    %p87 = pneg %p81
    %p88 = scmp.eq.s32.totalorder %s8, 3
    %p89 = por %p87, %p88
    %p90 = scmp.ne.s32.totalorder %s82, %s85
    %p91 = scmp.eq.s32.totalorder %s8, 0
    %p92 = por %p90, %p91
    %p93 = scmp.ne.s32.totalorder %s82, %s85
    %p94 = scmp.eq.s32.totalorder %s13, 3
    %p95 = por %p93, %p94
    %p96 = scmp.ne.s32.totalorder %s85, %s86
    %p97 = scmp.eq.s32.totalorder %s13, 0
    %p98 = por %p96, %p97
    %p99 = scmp.ne.s32.totalorder %s85, %s86
    %p100 = scmp.eq.s32.totalorder %s14, 3
    %p101 = por %p99, %p100
    %p103 = scmp.ne.s32.totalorder %s86, %s102
    %p104 = scmp.eq.s32.totalorder %s14, 0
    %p105 = por %p103, %p104
    %p106 = scmp.le.s32.totalorder 1, %s8
    %p107 = scmp.lt.s32.totalorder %s8, 5
    %p108 = pnand %p106, %p107
    %p109 = pneg %p108
    // Predicated region
    $region9: #{tpu_custom_call.1} parent=5 // pred_check
      _
    $region10: #{tpu_custom_call.1} parent=5 // pred_check_branch
      %111 = sbr.rel (%p108) target = $region12
    $region11: #{tpu_custom_call.1} parent=5 // pred_region
      %s112 = ssub.s32 %s8, 1
    $region12: #{tpu_custom_call.1} parent=5 // pred_fallthru
      _
    %p113 = scmp.lt.s32.totalorder %s8, 4
    // Predicated region
    $region13: #{tpu_custom_call.1} parent=5 // pred_check
      %p114 = pneg %p113
    $region14: #{tpu_custom_call.1} parent=5 // pred_check_branch
      %116 = sbr.rel (%p114) target = $region16
    $region15: #{tpu_custom_call.1} parent=5 // pred_region
      // Predicated region
      $region17: #{tpu_custom_call.1} parent=15 // pred_check
        %p117 = pneg %p40
      $region18: #{tpu_custom_call.1} parent=15 // pred_check_branch
        %119 = sbr.rel (%p117) target = $region20
      $region19: #{tpu_custom_call.1} parent=15 // pred_region
        %s120 = smul.u32 16, %s15
        %p121 = scmp.lt.s32.totalorder %s120, 31
        %s122 = scalar_select %p121, %s120, 31
        %s123 = smul.addr %s122, 8
        %s124 = scalar_lea.vmem %s0, %s123
        %s125 = smul.u32 16, %s15
      $region20: #{tpu_custom_call.1} parent=15 // pred_fallthru
        _
      // Predicated region
      $region21: #{tpu_custom_call.1} parent=15 // pred_check
        %p126 = pneg %p66
      $region22: #{tpu_custom_call.1} parent=15 // pred_check_branch
        %128 = sbr.rel (%p126) target = $region24
      $region23: #{tpu_custom_call.1} parent=15 // pred_region
        %s129 = smul.u32 16, %s16
        %p130 = scmp.lt.s32.totalorder %s129, 31
        %s131 = scalar_select %p130, %s129, 31
        %s132 = smul.addr %s131, 8
        %s133 = scalar_lea.vmem %s1, %s132
        %s134 = smul.u32 16, %s16
      $region24: #{tpu_custom_call.1} parent=15 // pred_fallthru
        _
    $region16: #{tpu_custom_call.1} parent=5 // pred_fallthru
      _
    %p135 = scmp.le.s32.totalorder 1, %s8
    %p136 = scmp.lt.s32.totalorder %s8, 5
    %p137 = pnand %p135, %p136
    %p138 = pneg %p137
    // Predicated region
    $region25: #{tpu_custom_call.1} parent=5 // pred_check
      _
    $region26: #{tpu_custom_call.1} parent=5 // pred_check_branch
      %140 = sbr.rel (%p137) target = $region28
    $region27: #{tpu_custom_call.1} parent=5 // pred_region
      %s141 = ssub.s32 %s8, 1
      %s142 = smul.u32 16, %s17
      %p143 = scmp.lt.s32.totalorder %s142, 31
      %s144 = scalar_select %p143, %s142, 31
      %s145 = smul.addr %s144, 8
      %s146 = scalar_lea.vmem %s0, %s145
      %p147 = pneg %p46
      %p148 = pneg %p43
      %s149 = smul.u32 16, %s18
      %p150 = scmp.lt.s32.totalorder %s149, 31
      %s151 = scalar_select %p150, %s149, 31
      %s152 = smul.addr %s151, 8
      %s153 = scalar_lea.vmem %s1, %s152
      %p154 = pneg %p72
      %p155 = pneg %p69
      %p156 = pneg %p98
      %p157 = pneg %p95
      %s158 = smul.u32 16, %s17
      %p159 = scmp.lt.s32.totalorder %s158, 31
      %s160 = scalar_select %p159, %s158, 31
      %s161 = smul.addr %s160, 8
      %s162 = scalar_lea.vmem %s2, %s161
      %s163 = smul.u32 16, %s17
      %p164 = scmp.lt.s32.totalorder %s163, 31
      %s165 = scalar_select %p164, %s163, 31
      %s166 = smul.addr %s165, 8
      %s167 = scalar_lea.vmem %s0, %s166
      %s168 = smul.u32 16, %s17
      %s169 = smul.u32 16, %s18
      %p170 = scmp.lt.s32.totalorder %s169, 31
      %s171 = scalar_select %p170, %s169, 31
      %s172 = smul.addr %s171, 8
      %s173 = scalar_lea.vmem %s1, %s172
      %s174 = smul.u32 16, %s18
      %s175 = smul.u32 16, %s17
      %p176 = scmp.lt.s32.totalorder %s175, 31
      %s177 = scalar_select %p176, %s175, 31
      %s178 = smul.addr %s177, 8
      %s179 = scalar_lea.vmem %s2, %s178
      %s180 = smul.u32 16, %s17
      %p181 = scmp.eq.s32.totalorder %s18, 0
      // Predicated region
      $region29: #{tpu_custom_call.1} parent=27 // pred_check
        %p182 = pneg %p181
      $region30: #{tpu_custom_call.1} parent=27 // pred_check_branch
        %184 = sbr.rel (%p182) target = $region32
      $region31: #{tpu_custom_call.1} parent=27 // pred_region
        %vm185 = vcmask 64512
        %186 = vst.msk [vmem:[#allocation2] sm:$0xff] %vm185, 0.0
        %187 = vst.msk [vmem:[#allocation2 + $0x8] sm:$0xff] %vm185, 0.0
        %188 = vst.msk [vmem:[#allocation2 + $0x10] sm:$0xff] %vm185, 0.0
        %189 = vst.msk [vmem:[#allocation2 + $0x18] sm:$0xff] %vm185, 0.0
        %190 = vst.msk [vmem:[#allocation2 + $0x20] sm:$0xff] %vm185, 0.0
        %191 = vst.msk [vmem:[#allocation2 + $0x28] sm:$0xff] %vm185, 0.0
        %192 = vst.msk [vmem:[#allocation2 + $0x30] sm:$0xff] %vm185, 0.0
        %193 = vst.msk [vmem:[#allocation2 + $0x38] sm:$0xff] %vm185, 0.0
        %194 = vst.msk [vmem:[#allocation2 + $0x40] sm:$0xff] %vm185, 0.0
        %195 = vst.msk [vmem:[#allocation2 + $0x48] sm:$0xff] %vm185, 0.0
        %196 = vst.msk [vmem:[#allocation2 + $0x50] sm:$0xff] %vm185, 0.0
        %197 = vst.msk [vmem:[#allocation2 + $0x58] sm:$0xff] %vm185, 0.0
        %198 = vst.msk [vmem:[#allocation2 + $0x60] sm:$0xff] %vm185, 0.0
        %199 = vst.msk [vmem:[#allocation2 + $0x68] sm:$0xff] %vm185, 0.0
        %200 = vst.msk [vmem:[#allocation2 + $0x70] sm:$0xff] %vm185, 0.0
        %201 = vst.msk [vmem:[#allocation2 + $0x78] sm:$0xff] %vm185, 0.0
      $region32: #{tpu_custom_call.1} parent=27 // pred_fallthru
        _
      %s202 = smul.u32 %s18, 128
      %v203 = vlaneseq
      %v204 = vand.u32 %v203, 127
      %v205 = vstv %s202
      %v206 = vadd.s32 %v204, %v205
      %v207 = vld [vmem:[%s167] sm:$0xff]
      %v208 = vld [vmem:[%s167 + $0x8] sm:$0xff]
      %v209 = vld [vmem:[%s167 + $0x10] sm:$0xff]
      %v210 = vld [vmem:[%s167 + $0x18] sm:$0xff]
      %v211 = vld [vmem:[%s167 + $0x20] sm:$0xff]
      %v212 = vld [vmem:[%s167 + $0x28] sm:$0xff]
      %v213 = vld [vmem:[%s167 + $0x30] sm:$0xff]
      %v214 = vld [vmem:[%s167 + $0x38] sm:$0xff]
      %v215 = vld [vmem:[%s167 + $0x40] sm:$0xff]
      %v216 = vld [vmem:[%s167 + $0x48] sm:$0xff]
      %v217 = vld [vmem:[%s167 + $0x50] sm:$0xff]
      %v218 = vld [vmem:[%s167 + $0x58] sm:$0xff]
      %v219 = vld [vmem:[%s167 + $0x60] sm:$0xff]
      %v220 = vld [vmem:[%s167 + $0x68] sm:$0xff]
      %v221 = vld [vmem:[%s167 + $0x70] sm:$0xff]
      %v222 = vld [vmem:[%s167 + $0x78] sm:$0xff]
      %223 = vset.pattern.permute.xlu0 0
      %224 = vperm.xlu0 %223, %v207
      %v225 = vpop.permute.xlu0 %224
      %226 = vset.pattern.permute.xlu0 0
      %227 = vperm.xlu0 %226, %v208
      %v228 = vpop.permute.xlu0 %227
      %229 = vset.pattern.permute.xlu0 0
      %230 = vperm.xlu0 %229, %v209
      %v231 = vpop.permute.xlu0 %230
      %232 = vset.pattern.permute.xlu0 0
      %233 = vperm.xlu0 %232, %v210
      %v234 = vpop.permute.xlu0 %233
      %235 = vset.pattern.permute.xlu0 0
      %236 = vperm.xlu0 %235, %v211
      %v237 = vpop.permute.xlu0 %236
      %238 = vset.pattern.permute.xlu0 0
      %239 = vperm.xlu0 %238, %v212
      %v240 = vpop.permute.xlu0 %239
      %241 = vset.pattern.permute.xlu0 0
      %242 = vperm.xlu0 %241, %v213
      %v243 = vpop.permute.xlu0 %242
      %244 = vset.pattern.permute.xlu0 0
      %245 = vperm.xlu0 %244, %v214
      %v246 = vpop.permute.xlu0 %245
      %247 = vset.pattern.permute.xlu0 0
      %248 = vperm.xlu0 %247, %v215
      %v249 = vpop.permute.xlu0 %248
      %250 = vset.pattern.permute.xlu0 0
      %251 = vperm.xlu0 %250, %v216
      %v252 = vpop.permute.xlu0 %251
      %253 = vset.pattern.permute.xlu0 0
      %254 = vperm.xlu0 %253, %v217
      %v255 = vpop.permute.xlu0 %254
      %256 = vset.pattern.permute.xlu0 0
      %257 = vperm.xlu0 %256, %v218
      %v258 = vpop.permute.xlu0 %257
      %259 = vset.pattern.permute.xlu0 0
      %260 = vperm.xlu0 %259, %v219
      %v261 = vpop.permute.xlu0 %260
      %262 = vset.pattern.permute.xlu0 0
      %263 = vperm.xlu0 %262, %v220
      %v264 = vpop.permute.xlu0 %263
      %265 = vset.pattern.permute.xlu0 0
      %266 = vperm.xlu0 %265, %v221
      %v267 = vpop.permute.xlu0 %266
      %268 = vset.pattern.permute.xlu0 0
      %269 = vperm.xlu0 %268, %v222
      %v270 = vpop.permute.xlu0 %269
      %vm271 = vcmp.eq.s32.totalorder %v225, %v206
      %vm272 = vcmp.eq.s32.totalorder %v228, %v206
      %vm273 = vcmp.eq.s32.totalorder %v231, %v206
      %vm274 = vcmp.eq.s32.totalorder %v234, %v206
      %vm275 = vcmp.eq.s32.totalorder %v237, %v206
      %vm276 = vcmp.eq.s32.totalorder %v240, %v206
      %vm277 = vcmp.eq.s32.totalorder %v243, %v206
      %vm278 = vcmp.eq.s32.totalorder %v246, %v206
      %vm279 = vcmp.eq.s32.totalorder %v249, %v206
      %vm280 = vcmp.eq.s32.totalorder %v252, %v206
      %vm281 = vcmp.eq.s32.totalorder %v255, %v206
      %vm282 = vcmp.eq.s32.totalorder %v258, %v206
      %vm283 = vcmp.eq.s32.totalorder %v261, %v206
      %vm284 = vcmp.eq.s32.totalorder %v264, %v206
      %vm285 = vcmp.eq.s32.totalorder %v267, %v206
      %vm286 = vcmp.eq.s32.totalorder %v270, %v206
      %v287 = vsel %vm271, 1, 0
      %v288 = vsel %vm272, 1, 0
      %v289 = vsel %vm273, 1, 0
      %v290 = vsel %vm274, 1, 0
      %v291 = vsel %vm275, 1, 0
      %v292 = vsel %vm276, 1, 0
      %v293 = vsel %vm277, 1, 0
      %v294 = vsel %vm278, 1, 0
      %v295 = vsel %vm279, 1, 0
      %v296 = vsel %vm280, 1, 0
      %v297 = vsel %vm281, 1, 0
      %v298 = vsel %vm282, 1, 0
      %v299 = vsel %vm283, 1, 0
      %v300 = vsel %vm284, 1, 0
      %v301 = vsel %vm285, 1, 0
      %v302 = vsel %vm286, 1, 0
      %v303 = vcvt.s32.f32 %v287
      %v304 = vcvt.s32.f32 %v288
      %v305 = vcvt.s32.f32 %v289
      %v306 = vcvt.s32.f32 %v290
      %v307 = vcvt.s32.f32 %v291
      %v308 = vcvt.s32.f32 %v292
      %v309 = vcvt.s32.f32 %v293
      %v310 = vcvt.s32.f32 %v294
      %v311 = vcvt.s32.f32 %v295
      %v312 = vcvt.s32.f32 %v296
      %v313 = vcvt.s32.f32 %v297
      %v314 = vcvt.s32.f32 %v298
      %v315 = vcvt.s32.f32 %v299
      %v316 = vcvt.s32.f32 %v300
      %v317 = vcvt.s32.f32 %v301
      %v318 = vcvt.s32.f32 %v302
      %v319 = vld [vmem:[#allocation2] sm:$0xff]
      %v320 = vld [vmem:[#allocation2 + $0x8] sm:$0xff]
      %v321 = vld [vmem:[#allocation2 + $0x10] sm:$0xff]
      %v322 = vld [vmem:[#allocation2 + $0x18] sm:$0xff]
      %v323 = vld [vmem:[#allocation2 + $0x20] sm:$0xff]
      %v324 = vld [vmem:[#allocation2 + $0x28] sm:$0xff]
      %v325 = vld [vmem:[#allocation2 + $0x30] sm:$0xff]
      %v326 = vld [vmem:[#allocation2 + $0x38] sm:$0xff]
      %v327 = vld [vmem:[#allocation2 + $0x40] sm:$0xff]
      %v328 = vld [vmem:[#allocation2 + $0x48] sm:$0xff]
      %v329 = vld [vmem:[#allocation2 + $0x50] sm:$0xff]
      %v330 = vld [vmem:[#allocation2 + $0x58] sm:$0xff]
      %v331 = vld [vmem:[#allocation2 + $0x60] sm:$0xff]
      %v332 = vld [vmem:[#allocation2 + $0x68] sm:$0xff]
      %v333 = vld [vmem:[#allocation2 + $0x70] sm:$0xff]
      %v334 = vld [vmem:[#allocation2 + $0x78] sm:$0xff]
      %v335 = vld [vmem:[%s173] sm:$0xff]
      %v336 = vld [vmem:[%s173 + $0x8] sm:$0xff]
      %v337 = vld [vmem:[%s173 + $0x10] sm:$0xff]
      %v338 = vld [vmem:[%s173 + $0x18] sm:$0xff]
      %v339 = vld [vmem:[%s173 + $0x20] sm:$0xff]
      %v340 = vld [vmem:[%s173 + $0x28] sm:$0xff]
      %v341 = vld [vmem:[%s173 + $0x30] sm:$0xff]
      %v342 = vld [vmem:[%s173 + $0x38] sm:$0xff]
      %v343 = vld [vmem:[%s173 + $0x40] sm:$0xff]
      %v344 = vld [vmem:[%s173 + $0x48] sm:$0xff]
      %v345 = vld [vmem:[%s173 + $0x50] sm:$0xff]
      %v346 = vld [vmem:[%s173 + $0x58] sm:$0xff]
      %v347 = vld [vmem:[%s173 + $0x60] sm:$0xff]
      %v348 = vld [vmem:[%s173 + $0x68] sm:$0xff]
      %v349 = vld [vmem:[%s173 + $0x70] sm:$0xff]
      %v350 = vld [vmem:[%s173 + $0x78] sm:$0xff]
      %351 = vmatprep.subr.mxu0 0.0
      %352 = vmatpush1.msra.mxu0 %v335
      %353 = vmatprep.subr.mxu0 0.0
      %354 = vmatpush1.msra.mxu0 %v336
      %355 = vmatprep.subr.mxu0 0.0
      %356 = vmatpush1.msra.mxu0 %v337
      %357 = vmatprep.subr.mxu0 0.0
      %358 = vmatpush1.msra.mxu0 %v338
      %359 = vmatprep.subr.mxu0 0.0
      %360 = vmatpush1.msra.mxu0 %v339
      %361 = vmatprep.subr.mxu0 0.0
      %362 = vmatpush1.msra.mxu0 %v340
      %363 = vmatprep.subr.mxu0 0.0
      %364 = vmatpush1.msra.mxu0 %v341
      %365 = vmatprep.subr.mxu0 0.0
      %366 = vmatpush1.msra.mxu0 %v342
      %367 = vmatprep.subr.mxu0 0.0
      %368 = vmatpush1.msra.mxu0 %v343
      %369 = vmatprep.subr.mxu0 0.0
      %370 = vmatpush1.msra.mxu0 %v344
      %371 = vmatprep.subr.mxu0 0.0
      %372 = vmatpush1.msra.mxu0 %v345
      %373 = vmatprep.subr.mxu0 0.0
      %374 = vmatpush1.msra.mxu0 %v346
      %375 = vmatprep.subr.mxu0 0.0
      %376 = vmatpush1.msra.mxu0 %v347
      %377 = vmatprep.subr.mxu0 0.0
      %378 = vmatpush1.msra.mxu0 %v348
      %379 = vmatprep.subr.mxu0 0.0
      %380 = vmatpush1.msra.mxu0 %v349
      %381 = vmatprep.subr.mxu0 0.0
      %382 = vmatpush1.msra.mxu0 %v350
      %383 = vmatprep.subr.mxu0 0.0
      %384 = vmatpush1.msra.mxu0 0.0
      %385 = vmatprep.subr.mxu0 0.0
      %386 = vmatpush1.msra.mxu0 0.0
      %387 = vmatprep.subr.mxu0 0.0
      %388 = vmatpush1.msra.mxu0 0.0
      %389 = vmatprep.subr.mxu0 0.0
      %390 = vmatpush1.msra.mxu0 0.0
      %391 = vmatprep.subr.mxu0 0.0
      %392 = vmatpush1.msra.mxu0 0.0
      %393 = vmatprep.subr.mxu0 0.0
      %394 = vmatpush1.msra.mxu0 0.0
      %395 = vmatprep.subr.mxu0 0.0
      %396 = vmatpush1.msra.mxu0 0.0
      %397 = vmatprep.subr.mxu0 0.0
      %398 = vmatpush1.msra.mxu0 0.0
      %399 = vmatprep.subr.mxu0 0.0
      %400 = vmatpush1.msra.mxu0 0.0
      %401 = vmatprep.subr.mxu0 0.0
      %402 = vmatpush1.msra.mxu0 0.0
      %403 = vmatprep.subr.mxu0 0.0
      %404 = vmatpush1.msra.mxu0 0.0
      %405 = vmatprep.subr.mxu0 0.0
      %406 = vmatpush1.msra.mxu0 0.0
      %407 = vmatprep.subr.mxu0 0.0
      %408 = vmatpush1.msra.mxu0 0.0
      %409 = vmatprep.subr.mxu0 0.0
      %410 = vmatpush1.msra.mxu0 0.0
      %411 = vmatprep.subr.mxu0 0.0
      %412 = vmatpush1.msra.mxu0 0.0
      %413 = vmatprep.subr.mxu0 0.0
      %414 = vmatpush1.msra.mxu0 0.0
      %415 = vmatprep.mubr.f32.mxu0 0.0
      %416 = vmatmul.mubr.f32.gmra.mrb[0].mxu0 %v303
      %v417 = vpop.f32.mrb[0].mxu0
      %v418 = vadd.f32 0.0, %v417
      %v419 = vpop.f32.mrb[0].mxu0
      %420 = vmatprep.mubr.f32.mxu0 0.0
      %421 = vmatmul.mubr.f32.gmra.mrb[0].mxu0 %v304
      %v422 = vpop.f32.mrb[0].mxu0
      %v423 = vadd.f32 0.0, %v422
      %v424 = vpop.f32.mrb[0].mxu0
      %425 = vmatprep.mubr.f32.mxu0 0.0
      %426 = vmatmul.mubr.f32.gmra.mrb[0].mxu0 %v305
      %v427 = vpop.f32.mrb[0].mxu0
      %v428 = vadd.f32 0.0, %v427
      %v429 = vpop.f32.mrb[0].mxu0
      %430 = vmatprep.mubr.f32.mxu0 0.0
      %431 = vmatmul.mubr.f32.gmra.mrb[0].mxu0 %v306
      %v432 = vpop.f32.mrb[0].mxu0
      %v433 = vadd.f32 0.0, %v432
      %v434 = vpop.f32.mrb[0].mxu0
      %435 = vmatprep.mubr.f32.mxu0 0.0
      %436 = vmatmul.mubr.f32.gmra.mrb[0].mxu0 %v307
      %v437 = vpop.f32.mrb[0].mxu0
      %v438 = vadd.f32 0.0, %v437
      %v439 = vpop.f32.mrb[0].mxu0
      %440 = vmatprep.mubr.f32.mxu0 0.0
      %441 = vmatmul.mubr.f32.gmra.mrb[0].mxu0 %v308
      %v442 = vpop.f32.mrb[0].mxu0
      %v443 = vadd.f32 0.0, %v442
      %v444 = vpop.f32.mrb[0].mxu0
      %445 = vmatprep.mubr.f32.mxu0 0.0
      %446 = vmatmul.mubr.f32.gmra.mrb[0].mxu0 %v309
      %v447 = vpop.f32.mrb[0].mxu0
      %v448 = vadd.f32 0.0, %v447
      %v449 = vpop.f32.mrb[0].mxu0
      %450 = vmatprep.mubr.f32.mxu0 0.0
      %451 = vmatmul.mubr.f32.gmra.mrb[0].mxu0 %v310
      %v452 = vpop.f32.mrb[0].mxu0
      %v453 = vadd.f32 0.0, %v452
      %v454 = vpop.f32.mrb[0].mxu0
      %455 = vmatprep.mubr.f32.mxu0 0.0
      %456 = vmatmul.mubr.f32.gmra.mrb[0].mxu0 %v311
      %v457 = vpop.f32.mrb[0].mxu0
      %v458 = vadd.f32 0.0, %v457
      %v459 = vpop.f32.mrb[0].mxu0
      %460 = vmatprep.mubr.f32.mxu0 0.0
      %461 = vmatmul.mubr.f32.gmra.mrb[0].mxu0 %v312
      %v462 = vpop.f32.mrb[0].mxu0
      %v463 = vadd.f32 0.0, %v462
      %v464 = vpop.f32.mrb[0].mxu0
      %465 = vmatprep.mubr.f32.mxu0 0.0
      %466 = vmatmul.mubr.f32.gmra.mrb[0].mxu0 %v313
      %v467 = vpop.f32.mrb[0].mxu0
      %v468 = vadd.f32 0.0, %v467
      %v469 = vpop.f32.mrb[0].mxu0
      %470 = vmatprep.mubr.f32.mxu0 0.0
      %471 = vmatmul.mubr.f32.gmra.mrb[0].mxu0 %v314
      %v472 = vpop.f32.mrb[0].mxu0
      %v473 = vadd.f32 0.0, %v472
      %v474 = vpop.f32.mrb[0].mxu0
      %475 = vmatprep.mubr.f32.mxu0 0.0
      %476 = vmatmul.mubr.f32.gmra.mrb[0].mxu0 %v315
      %v477 = vpop.f32.mrb[0].mxu0
      %v478 = vadd.f32 0.0, %v477
      %v479 = vpop.f32.mrb[0].mxu0
      %480 = vmatprep.mubr.f32.mxu0 0.0
      %481 = vmatmul.mubr.f32.gmra.mrb[0].mxu0 %v316
      %v482 = vpop.f32.mrb[0].mxu0
      %v483 = vadd.f32 0.0, %v482
      %v484 = vpop.f32.mrb[0].mxu0
      %485 = vmatprep.mubr.f32.mxu0 0.0
      %486 = vmatmul.mubr.f32.gmra.mrb[0].mxu0 %v317
      %v487 = vpop.f32.mrb[0].mxu0
      %v488 = vadd.f32 0.0, %v487
      %v489 = vpop.f32.mrb[0].mxu0
      %490 = vmatprep.mubr.f32.mxu0 0.0
      %491 = vmatmul.mubr.f32.gmra.mrb[0].mxu0 %v318
      %v492 = vpop.f32.mrb[0].mxu0
      %v493 = vadd.f32 0.0, %v492
      %v494 = vpop.f32.mrb[0].mxu0
      %495 = vdwg.mxu0
      %v496 = vadd.f32 %v319, %v418
      %v497 = vadd.f32 %v320, %v423
      %v498 = vadd.f32 %v321, %v428
      %v499 = vadd.f32 %v322, %v433
      %v500 = vadd.f32 %v323, %v438
      %v501 = vadd.f32 %v324, %v443
      %v502 = vadd.f32 %v325, %v448
      %v503 = vadd.f32 %v326, %v453
      %v504 = vadd.f32 %v327, %v458
      %v505 = vadd.f32 %v328, %v463
      %v506 = vadd.f32 %v329, %v468
      %v507 = vadd.f32 %v330, %v473
      %v508 = vadd.f32 %v331, %v478
      %v509 = vadd.f32 %v332, %v483
      %v510 = vadd.f32 %v333, %v488
      %v511 = vadd.f32 %v334, %v493
      %vm512 = vcmask 64512
      %513 = vst.msk [vmem:[#allocation2] sm:$0xff] %vm512, %v496
      %514 = vst.msk [vmem:[#allocation2 + $0x8] sm:$0xff] %vm512, %v497
      %515 = vst.msk [vmem:[#allocation2 + $0x10] sm:$0xff] %vm512, %v498
      %516 = vst.msk [vmem:[#allocation2 + $0x18] sm:$0xff] %vm512, %v499
      %517 = vst.msk [vmem:[#allocation2 + $0x20] sm:$0xff] %vm512, %v500
      %518 = vst.msk [vmem:[#allocation2 + $0x28] sm:$0xff] %vm512, %v501
      %519 = vst.msk [vmem:[#allocation2 + $0x30] sm:$0xff] %vm512, %v502
      %520 = vst.msk [vmem:[#allocation2 + $0x38] sm:$0xff] %vm512, %v503
      %521 = vst.msk [vmem:[#allocation2 + $0x40] sm:$0xff] %vm512, %v504
      %522 = vst.msk [vmem:[#allocation2 + $0x48] sm:$0xff] %vm512, %v505
      %523 = vst.msk [vmem:[#allocation2 + $0x50] sm:$0xff] %vm512, %v506
      %524 = vst.msk [vmem:[#allocation2 + $0x58] sm:$0xff] %vm512, %v507
      %525 = vst.msk [vmem:[#allocation2 + $0x60] sm:$0xff] %vm512, %v508
      %526 = vst.msk [vmem:[#allocation2 + $0x68] sm:$0xff] %vm512, %v509
      %527 = vst.msk [vmem:[#allocation2 + $0x70] sm:$0xff] %vm512, %v510
      %528 = vst.msk [vmem:[#allocation2 + $0x78] sm:$0xff] %vm512, %v511
      %p529 = scmp.eq.s32.totalorder %s18, 1
      // Predicated region
      $region33: #{tpu_custom_call.1} parent=27 // pred_check
        %p530 = pneg %p529
      $region34: #{tpu_custom_call.1} parent=27 // pred_check_branch
        %532 = sbr.rel (%p530) target = $region36
      $region35: #{tpu_custom_call.1} parent=27 // pred_region
        %v533 = vld [vmem:[#allocation2] sm:$0xff]
        %v534 = vld [vmem:[#allocation2 + $0x8] sm:$0xff]
        %v535 = vld [vmem:[#allocation2 + $0x10] sm:$0xff]
        %v536 = vld [vmem:[#allocation2 + $0x18] sm:$0xff]
        %v537 = vld [vmem:[#allocation2 + $0x20] sm:$0xff]
        %v538 = vld [vmem:[#allocation2 + $0x28] sm:$0xff]
        %v539 = vld [vmem:[#allocation2 + $0x30] sm:$0xff]
        %v540 = vld [vmem:[#allocation2 + $0x38] sm:$0xff]
        %v541 = vld [vmem:[#allocation2 + $0x40] sm:$0xff]
        %v542 = vld [vmem:[#allocation2 + $0x48] sm:$0xff]
        %v543 = vld [vmem:[#allocation2 + $0x50] sm:$0xff]
        %v544 = vld [vmem:[#allocation2 + $0x58] sm:$0xff]
        %v545 = vld [vmem:[#allocation2 + $0x60] sm:$0xff]
        %v546 = vld [vmem:[#allocation2 + $0x68] sm:$0xff]
        %v547 = vld [vmem:[#allocation2 + $0x70] sm:$0xff]
        %v548 = vld [vmem:[#allocation2 + $0x78] sm:$0xff]
        %549 = vst.msk [vmem:[%s179] sm:$0xff] %vm512, %v533
        %550 = vst.msk [vmem:[%s179 + $0x8] sm:$0xff] %vm512, %v534
        %551 = vst.msk [vmem:[%s179 + $0x10] sm:$0xff] %vm512, %v535
        %552 = vst.msk [vmem:[%s179 + $0x18] sm:$0xff] %vm512, %v536
        %553 = vst.msk [vmem:[%s179 + $0x20] sm:$0xff] %vm512, %v537
        %554 = vst.msk [vmem:[%s179 + $0x28] sm:$0xff] %vm512, %v538
        %555 = vst.msk [vmem:[%s179 + $0x30] sm:$0xff] %vm512, %v539
        %556 = vst.msk [vmem:[%s179 + $0x38] sm:$0xff] %vm512, %v540
        %557 = vst.msk [vmem:[%s179 + $0x40] sm:$0xff] %vm512, %v541
        %558 = vst.msk [vmem:[%s179 + $0x48] sm:$0xff] %vm512, %v542
        %559 = vst.msk [vmem:[%s179 + $0x50] sm:$0xff] %vm512, %v543
        %560 = vst.msk [vmem:[%s179 + $0x58] sm:$0xff] %vm512, %v544
        %561 = vst.msk [vmem:[%s179 + $0x60] sm:$0xff] %vm512, %v545
        %562 = vst.msk [vmem:[%s179 + $0x68] sm:$0xff] %vm512, %v546
        %563 = vst.msk [vmem:[%s179 + $0x70] sm:$0xff] %vm512, %v547
        %564 = vst.msk [vmem:[%s179 + $0x78] sm:$0xff] %vm512, %v548
      $region36: #{tpu_custom_call.1} parent=27 // pred_fallthru
        _
      %s565 = smul.u32 16, %s17
      %p566 = scmp.lt.s32.totalorder %s565, 31
      %s567 = scalar_select %p566, %s565, 31
      %s568 = smul.addr %s567, 8
      %s569 = scalar_lea.vmem %s2, %s568
      // Predicated region
      $region37: #{tpu_custom_call.1} parent=27 // pred_check
        %p570 = pneg %p95
      $region38: #{tpu_custom_call.1} parent=27 // pred_check_branch
        %572 = sbr.rel (%p570) target = $region40
      $region39: #{tpu_custom_call.1} parent=27 // pred_region
        %s573 = smul.u32 16, %s17
      $region40: #{tpu_custom_call.1} parent=27 // pred_fallthru
        _
    $region28: #{tpu_custom_call.1} parent=5 // pred_fallthru
      _
    %p574 = scmp.le.s32.totalorder 2, %s8
    // Predicated region
    $region41: #{tpu_custom_call.1} parent=5 // pred_check
      %p575 = pneg %p574
    $region42: #{tpu_custom_call.1} parent=5 // pred_check_branch
      %577 = sbr.rel (%p575) target = $region44
    $region43: #{tpu_custom_call.1} parent=5 // pred_region
      %s578 = ssub.s32 %s8, 2
      // Predicated region
      $region45: #{tpu_custom_call.1} parent=43 // pred_check
        %p579 = pneg %p101
      $region46: #{tpu_custom_call.1} parent=43 // pred_check_branch
        %581 = sbr.rel (%p579) target = $region48
      $region47: #{tpu_custom_call.1} parent=43 // pred_region
        %s582 = smul.u32 16, %s19
        %p583 = scmp.lt.s32.totalorder %s582, 31
        %s584 = scalar_select %p583, %s582, 31
        %s585 = smul.addr %s584, 8
        %s586 = scalar_lea.vmem %s2, %s585
      $region48: #{tpu_custom_call.1} parent=43 // pred_fallthru
        _
    $region44: #{tpu_custom_call.1} parent=5 // pred_fallthru
      _
  $region6: #{tpu_custom_call.1} parent=0 // loop_footer
    %s12 = sadd.s32 1, %s8
  $region7: #{tpu_custom_call.1} parent=0 // loop_footer_branch
    %7 = sbr.rel target = $region3
  $region8: #{tpu_custom_call.1} parent=0 // loop_exit
    _

</llo_original>
